<compile_context>
chip_gen: v7x
topology: tpu7x:2x2x1
jax: 0.10.0
libtpu: 0.0.40
codegen_flags: <defaults>
</compile_context>

<pallas_src>
import functools

import jax
import jax.numpy as jnp
from jax import lax
from jax.experimental import pallas as pl
from jax.experimental.pallas import tpu as pltpu


def _ntxent_kernel(rows_ref, part_ref, keys_ref, out_ref, m_ref, l_ref, *,
                   tm, tk, temperature, use_cosine):
    i = pl.program_id(0)            # query row strip (parallel)
    j = pl.program_id(1)            # key / column tile (reduction, innermost)
    last_j = pl.num_programs(1) - 1

    inv_t = jnp.float32(1.0 / temperature)
    neg_big = jnp.float32(-1e30)

    @pl.when(j == 0)
    def _init():
        l_ref[...] = jnp.zeros_like(l_ref)
        if not use_cosine:
            m_ref[...] = jnp.full_like(m_ref, neg_big)

    # Canonical MXU feed: [tm, dp] x [dp, tk] (keys pre-transposed in the
    # wrapper; rows already normalized (if cosine) and pre-scaled by 1/T).
    s = jnp.dot(rows_ref[...], keys_ref[...],
                preferred_element_type=jnp.float32)            # [tm, tk]

    # Self-mask: global_col == global_row  <=>  (c - r) == i*tm - j*tk.
    # One loop-invariant iota difference + scalar compare; cost independent
    # of N (only the current [tm, tk] tile).
    delta = (lax.broadcasted_iota(jnp.int32, (tm, tk), 1)
             - lax.broadcasted_iota(jnp.int32, (tm, tk), 0))
    masked = jnp.where(delta == (i * tm - j * tk), neg_big, s)

    if use_cosine:
        # Cosine logits are bounded by 1/T -> fixed softmax shift, no per-tile
        # running-max XLU reduce needed.
        l_ref[...] += jnp.sum(jnp.exp(masked - inv_t), axis=-1, keepdims=True)
    else:
        m_prev = m_ref[...]
        m_new = jnp.maximum(m_prev, jnp.max(masked, axis=-1, keepdims=True))
        l_ref[...] = (l_ref[...] * jnp.exp(m_prev - m_new)
                      + jnp.sum(jnp.exp(masked - m_new), axis=-1, keepdims=True))
        m_ref[...] = m_new

    @pl.when(j == last_j)
    def _finalize():
        # Positive logit straight from the features.  rows and partner each
        # carry one 1/T factor, so multiply by T once to recover sim/T.
        pos = jnp.float32(temperature) * jnp.sum(
            rows_ref[...].astype(jnp.float32) *
            part_ref[...].astype(jnp.float32),
            axis=-1, keepdims=True)                            # [tm, 1]
        m_fin = inv_t if use_cosine else m_ref[...]
        per_row = m_fin + jnp.log(l_ref[...]) - pos            # [tm, 1]
        # Lane-dense output block (unmasked vst); reduced in the wrapper.
        out_ref[...] = jnp.broadcast_to(per_row, (tm, 128))


def _vmem_capacity_bytes():
    """Per-core VMEM capacity; conservative fallback if the query fails."""
    try:
        cap = int(pltpu.get_tpu_info().vmem_capacity_bytes)
        if cap > 0:
            return cap
    except Exception:
        pass
    return 64 * 2**20            # v7x per-TensorCore VMEM (smallest of the 3)


def _pick_row_tile(batch_size, dp, itemsize, cap):
    """Largest multiple of 8 dividing batch_size, <= cap, bounded block bytes.

    Fallback: largest divisor of batch_size (correct, but sublane-padded
    layouts when < 8 — pad B to a multiple of 8 for best performance).
    """
    byte_cap = 8 * 2**20
    best = 0
    t = 8
    while t <= min(batch_size, cap):
        if batch_size % t == 0 and t * dp * itemsize <= byte_cap:
            best = t
        t += 8
    if best:
        return best
    for t in range(min(batch_size, cap), 0, -1):
        if batch_size % t == 0:
            return t
    return 1


def _pick_col_tile(n, dp, itemsize, cap):
    """Key-axis tile: a multiple of 128 dividing n with bounded block bytes,
    or the full width when n is not 128-aligned (single key tile)."""
    if n % 128 != 0:
        # TODO(synk): pad + mask the key axis for non-128-aligned N.
        return n
    byte_cap = 16 * 2**20
    best = 128
    t = 128
    while t <= min(n, cap):
        if n % t == 0 and dp * t * itemsize <= byte_cap:
            best = t
        t += 128
    return best


def ntxent_loss(zis, zjs, *, temperature=0.5, use_cosine_similarity=True,
                mxu_dtype=None):
    """zis, zjs: [B, D] arrays. Returns scalar float32 loss.

    mxu_dtype: optional dtype for the similarity-matmul operands (e.g.
    jnp.bfloat16 to use the bf16-native MXU even for f32 inputs; default None
    keeps the input dtype, i.e. exact f32 similarity for f32 inputs).
    """
    assert zis.shape == zjs.shape and zis.ndim == 2
    batch_size, d = zis.shape
    n = 2 * batch_size
    inv_t = 1.0 / float(temperature)

    reps = jnp.concatenate([zjs, zis], axis=0)                 # [N, D]

    # Lane-dense layout: zero-pad features to a multiple of 128.
    d_pad = (-d) % 128
    if d_pad:
        reps = jnp.pad(reps, ((0, 0), (0, d_pad)))
    dp = d + d_pad

    mm_dtype = jnp.dtype(mxu_dtype) if mxu_dtype is not None else reps.dtype

    # Hoisted (once, outside the grid): cosine normalization, 1/T fold on the
    # query side, and the key transpose for a canonical MXU contraction.
    repsf = reps.astype(jnp.float32)
    if use_cosine_similarity:
        # Per-row norm clamp (vs torch's clamp on the norm product) — identical
        # for non-degenerate embeddings.
        inv_norm = lax.rsqrt(jnp.maximum(
            jnp.sum(repsf * repsf, axis=-1, keepdims=True), jnp.float32(1e-16)))
        repsf = repsf * inv_norm
    reps_q = (repsf * jnp.float32(inv_t)).astype(mm_dtype)     # [N, Dp] queries
    reps_kt = repsf.T.astype(mm_dtype)                         # [Dp, N] keys

    itemsize = jnp.dtype(mm_dtype).itemsize
    vmem_cap = _vmem_capacity_bytes()
    big_vmem = vmem_cap >= 96 * 2**20            # v5e / v6e (128 MiB) vs v7x (64 MiB)
    row_cap = 512 if big_vmem else 256
    col_cap = 2048 if big_vmem else 1024
    vmem_limit = int(max(32 * 2**20, min(int(0.7 * vmem_cap), 100 * 2**20)))

    tm = _pick_row_tile(batch_size, dp, itemsize, row_cap)
    tk = _pick_col_tile(n, dp, itemsize, col_cap)
    num_strips = n // tm
    num_ktiles = n // tk
    half = batch_size // tm                      # strips per half of reps

    kernel = functools.partial(
        _ntxent_kernel,
        tm=tm, tk=tk,
        temperature=float(temperature),
        use_cosine=bool(use_cosine_similarity),
    )

    out = pl.pallas_call(
        kernel,
        out_shape=jax.ShapeDtypeStruct((n, 128), jnp.float32),
        grid_spec=pltpu.PrefetchScalarGridSpec(
            num_scalar_prefetch=0,
            grid=(num_strips, num_ktiles),
            in_specs=[
                # query row strip (constant across key tiles -> one DMA/strip)
                pl.BlockSpec((tm, dp), lambda i, j: (i, 0)),
                # positive-partner strip: (i + half) mod num_strips
                pl.BlockSpec((tm, dp),
                             lambda i, j: ((i + half) % num_strips, 0)),
                # pre-transposed key tile, pipelined over j
                pl.BlockSpec((dp, tk), lambda i, j: (0, j)),
            ],
            # lane-dense per-row losses; one block per row strip.
            out_specs=pl.BlockSpec((tm, 128), lambda i, j: (i, 0)),
            scratch_shapes=[pltpu.VMEM((tm, 1), jnp.float32),   # running max m
                            pltpu.VMEM((tm, 1), jnp.float32)],  # running sum l
        ),
        compiler_params=pltpu.CompilerParams(
            # Row-strip axis has no cross-strip carry -> parallel (v7x megacore);
            # key-tile axis carries the online logsumexp -> arbitrary.
            dimension_semantics=("parallel", "arbitrary"),
            vmem_limit_bytes=vmem_limit,
        ),
    )(reps_q, reps_q, reps_kt)

    return jnp.sum(out[:, 0]) / jnp.float32(n)


def _ntxent_loss_ref(zis, zjs, *, temperature=0.5, use_cosine_similarity=True):
    """Pure-JAX reference matching the PyTorch module."""
    b = zis.shape[0]
    n = 2 * b
    r = jnp.concatenate([zjs, zis], axis=0).astype(jnp.float32)
    sim = r @ r.T
    if use_cosine_similarity:
        norm = jnp.sqrt(jnp.sum(r * r, axis=-1, keepdims=True))
        sim = sim / jnp.maximum(norm * norm.T, 1e-8)
    logits = sim / temperature
    row = jnp.arange(n)[:, None]
    col = jnp.arange(n)[None, :]
    pos_col = jnp.where(row < b, row + b, row - b)
    masked = jnp.where(row == col, -jnp.inf, logits)
    lse = jax.scipy.special.logsumexp(masked, axis=-1)
    pos = jnp.sum(jnp.where(col == pos_col, logits, 0.0), axis=-1)
    return jnp.sum(lse - pos) / n


if __name__ == "__main__":
    key = jax.random.PRNGKey(0)
    k1, k2 = jax.random.split(key)
    batch, dim = 8, 32
    zis = jax.random.normal(k1, (batch, dim), dtype=jnp.float32)
    zjs = jax.random.normal(k2, (batch, dim), dtype=jnp.float32)

    # Cosine-similarity path (default).
    loss = ntxent_loss(zis, zjs, temperature=0.5, use_cosine_similarity=True)
    loss = jax.block_until_ready(loss)
    ref = _ntxent_loss_ref(zis, zjs, temperature=0.5,
                           use_cosine_similarity=True)
    assert jnp.allclose(loss, ref, rtol=1e-5, atol=1e-5), (loss, ref)

    # Dot-similarity path.
    loss_dot = jax.block_until_ready(
        ntxent_loss(zis, zjs, temperature=0.5, use_cosine_similarity=False))
    ref_dot = _ntxent_loss_ref(zis, zjs, temperature=0.5,
                               use_cosine_similarity=False)
    assert jnp.allclose(loss_dot, ref_dot, rtol=1e-5, atol=1e-5), (
        loss_dot, ref_dot)

    # bf16 MXU-operand path for f32 inputs (gated behind a flag; loose tol).
    loss_bf16 = jax.block_until_ready(
        ntxent_loss(zis, zjs, temperature=0.5, use_cosine_similarity=True,
                    mxu_dtype=jnp.bfloat16))
    assert jnp.allclose(loss_bf16, ref, rtol=5e-2, atol=5e-2), (loss_bf16, ref)

    print("KERNEL_OK")
</pallas_src>

<mosaic_0001>
module attributes {stable_mosaic.version = 11 : i64} {
  func.func @_ntxent_kernel(%arg0: i32, %arg1: i32, %arg2: memref<8x128xf32, #tpu.memory_space<vmem>>, %arg3: memref<8x128xf32, #tpu.memory_space<vmem>>, %arg4: memref<128x16xf32, #tpu.memory_space<vmem>>, %arg5: memref<8x128xf32, #tpu.memory_space<vmem>>, %arg6: memref<8x1xf32, #tpu.memory_space<vmem>>, %arg7: memref<8x1xf32, #tpu.memory_space<vmem>>) attributes {dimension_semantics = [#tpu.dimension_semantics<parallel>, #tpu.dimension_semantics<arbitrary>], iteration_bounds = array<i64: 2, 1>, scalar_prefetch = 0 : i64, scratch_operands = 2 : i64, tpu.core_type = #tpu.core_type<tc>, window_params = [{transform_indices = @transform_0, window_bounds = array<i64: 8, 128>}, {transform_indices = @transform_1, window_bounds = array<i64: 8, 128>}, {transform_indices = @transform_2, window_bounds = array<i64: 128, 16>}, {transform_indices = @transform_3, window_bounds = array<i64: 8, 128>}]} {
    %c0_i32 = arith.constant 0 : i32
    %0 = arith.cmpi eq, %arg1, %c0_i32 : i32
    %1 = arith.extui %0 : i1 to i32
    %c0_i32_0 = arith.constant 0 : i32
    %2 = arith.cmpi ne, %1, %c0_i32_0 : i32
    scf.if %2 {
      %cst_14 = arith.constant 0.000000e+00 : f32
      %27 = vector.broadcast %cst_14 : f32 to vector<8x1xf32>
      %c0_15 = arith.constant 0 : index
      %c0_16 = arith.constant 0 : index
      %28 = vector.load %arg7[%c0_15, %c0_16] : memref<8x1xf32, #tpu.memory_space<vmem>>, vector<8x1xf32>
      tpu.vector_store %arg7[%c0_15, %c0_16], %27 {strides = array<i32>} : memref<8x1xf32, #tpu.memory_space<vmem>>, vector<8x1xf32>,
    } else {
    }
    %c0 = arith.constant 0 : index
    %c0_1 = arith.constant 0 : index
    %3 = vector.load %arg2[%c0, %c0_1] : memref<8x128xf32, #tpu.memory_space<vmem>>, vector<8x128xf32>
    %c0_2 = arith.constant 0 : index
    %c0_3 = arith.constant 0 : index
    %4 = vector.load %arg4[%c0_2, %c0_3] : memref<128x16xf32, #tpu.memory_space<vmem>>, vector<128x16xf32>
    %cst = arith.constant dense<0.000000e+00> : vector<8x16xf32>
    %5 = tpu.matmul %3, %4, %cst {dimension_numbers = #tpu.dot_dimension_numbers<[1], [0], [0], [1], [0, 0, 1, 1], [], []>} : vector<8x128xf32>, vector<128x16xf32>, vector<8x16xf32> -> vector<8x16xf32>
    %6 = tpu.iota {dimensions = array<i32: 1>} : vector<8x16xi32>
    %7 = tpu.iota {dimensions = array<i32: 0>} : vector<8x16xi32>
    %8 = arith.subi %6, %7 : vector<8x16xi32>
    %c8_i32 = arith.constant 8 : i32
    %9 = arith.muli %arg0, %c8_i32 : i32
    %c16_i32 = arith.constant 16 : i32
    %10 = arith.muli %arg1, %c16_i32 : i32
    %11 = arith.subi %9, %10 : i32
    %12 = vector.broadcast %11 : i32 to vector<8x16xi32>
    %13 = arith.cmpi eq, %8, %12 : vector<8x16xi32>
    %cst_4 = arith.constant -1.000000e+30 : f32
    %14 = vector.broadcast %cst_4 : f32 to vector<8x16xf32>
    %15 = arith.select %13, %14, %5 : vector<8x16xi1>, vector<8x16xf32>
    %c0_5 = arith.constant 0 : index
    %c0_6 = arith.constant 0 : index
    %16 = vector.load %arg7[%c0_5, %c0_6] : memref<8x1xf32, #tpu.memory_space<vmem>>, vector<8x1xf32>
    %cst_7 = arith.constant 2.000000e+00 : f32
    %17 = vector.broadcast %cst_7 : f32 to vector<8x16xf32>
    %18 = arith.subf %15, %17 : vector<8x16xf32>
    %19 = math.exp %18 : vector<8x16xf32>
    %cst_8 = arith.constant dense<0.000000e+00> : vector<8xf32>
    %20 = vector.multi_reduction <add>, %19, %cst_8 [1] : vector<8x16xf32> to vector<8xf32>
    %21 = vector.shape_cast %20 : vector<8xf32> to vector<8x1xf32>
    %22 = arith.addf %16, %21 : vector<8x1xf32>
    %c0_9 = arith.constant 0 : index
    %c0_10 = arith.constant 0 : index
    %23 = vector.load %arg7[%c0_9, %c0_10] : memref<8x1xf32, #tpu.memory_space<vmem>>, vector<8x1xf32>
    tpu.vector_store %arg7[%c0_9, %c0_10], %22 {strides = array<i32>} : memref<8x1xf32, #tpu.memory_space<vmem>>, vector<8x1xf32>,
    %c0_i32_11 = arith.constant 0 : i32
    %24 = arith.cmpi eq, %arg1, %c0_i32_11 : i32
    %25 = arith.extui %24 : i1 to i32
    %cst_12 = arith.constant 2.000000e+00 : f32
    %c0_i32_13 = arith.constant 0 : i32
    %26 = arith.cmpi ne, %25, %c0_i32_13 : i32
    scf.if %26 {
      %c0_14 = arith.constant 0 : index
      %c0_15 = arith.constant 0 : index
      %27 = vector.load %arg2[%c0_14, %c0_15] : memref<8x128xf32, #tpu.memory_space<vmem>>, vector<8x128xf32>
      %c0_16 = arith.constant 0 : index
      %c0_17 = arith.constant 0 : index
      %28 = vector.load %arg3[%c0_16, %c0_17] : memref<8x128xf32, #tpu.memory_space<vmem>>, vector<8x128xf32>
      %29 = arith.mulf %27, %28 : vector<8x128xf32>
      %cst_18 = arith.constant dense<0.000000e+00> : vector<8xf32>
      %30 = vector.multi_reduction <add>, %29, %cst_18 [1] : vector<8x128xf32> to vector<8xf32>
      %31 = vector.shape_cast %30 : vector<8xf32> to vector<8x1xf32>
      %cst_19 = arith.constant 5.000000e-01 : f32
      %32 = vector.broadcast %cst_19 : f32 to vector<8x1xf32>
      %33 = arith.mulf %32, %31 : vector<8x1xf32>
      %c0_20 = arith.constant 0 : index
      %c0_21 = arith.constant 0 : index
      %34 = vector.load %arg7[%c0_20, %c0_21] : memref<8x1xf32, #tpu.memory_space<vmem>>, vector<8x1xf32>
      %35 = math.log %34 : vector<8x1xf32>
      %36 = vector.broadcast %cst_12 : f32 to vector<8x1xf32>
      %37 = arith.addf %36, %35 : vector<8x1xf32>
      %38 = arith.subf %37, %33 : vector<8x1xf32>
      %39 = vector.shape_cast %38 : vector<8x1xf32> to vector<8x1xf32>
      %40 = vector.broadcast %39 : vector<8x1xf32> to vector<8x128xf32>
      %c0_22 = arith.constant 0 : index
      %c0_23 = arith.constant 0 : index
      %41 = vector.load %arg5[%c0_22, %c0_23] : memref<8x128xf32, #tpu.memory_space<vmem>>, vector<8x128xf32>
      tpu.vector_store %arg5[%c0_22, %c0_23], %40 {strides = array<i32>} : memref<8x128xf32, #tpu.memory_space<vmem>>, vector<8x128xf32>,
    } else {
    }
    return
  }
  func.func @transform_0(%arg0: i32, %arg1: i32) -> (i32, i32) {
    %c0_i32 = arith.constant 0 : i32
    %c0_i32_0 = arith.constant 0 : i32
    return %arg0, %c0_i32 : i32, i32
  }
  func.func @transform_1(%arg0: i32, %arg1: i32) -> (i32, i32) {
    %c1_i32 = arith.constant 1 : i32
    %0 = arith.addi %arg0, %c1_i32 : i32
    %c2_i32 = arith.constant 2 : i32
    %c0_i32 = arith.constant 0 : i32
    %1 = arith.cmpi eq, %c2_i32, %c0_i32 : i32
    %c1_i32_0 = arith.constant 1 : i32
    %2 = arith.select %1, %c1_i32_0, %c2_i32 : i32
    %3 = arith.remsi %0, %2 : i32
    %c0_i32_1 = arith.constant 0 : i32
    %4 = arith.cmpi ne, %3, %c0_i32_1 : i32
    %c0_i32_2 = arith.constant 0 : i32
    %5 = arith.cmpi slt, %3, %c0_i32_2 : i32
    %c0_i32_3 = arith.constant 0 : i32
    %6 = arith.cmpi slt, %2, %c0_i32_3 : i32
    %7 = arith.xori %5, %6 : i1
    %8 = arith.andi %7, %4 : i1
    %9 = arith.addi %3, %2 : i32
    %10 = arith.select %8, %9, %3 : i32
    %c0_i32_4 = arith.constant 0 : i32
    %c0_i32_5 = arith.constant 0 : i32
    return %10, %c0_i32_4 : i32, i32
  }
  func.func @transform_2(%arg0: i32, %arg1: i32) -> (i32, i32) {
    %c0_i32 = arith.constant 0 : i32
    %c0_i32_0 = arith.constant 0 : i32
    return %c0_i32, %arg1 : i32, i32
  }
  func.func @transform_3(%arg0: i32, %arg1: i32) -> (i32, i32) {
    %c0_i32 = arith.constant 0 : i32
    %c0_i32_0 = arith.constant 0 : i32
    return %arg0, %c0_i32 : i32, i32
  }
}

</mosaic_0001>

<llo_original>
// kernel: tpu_custom_call.1
$region0: #{tpu_custom_call.1}
  #allocation0 [shape = 'u32[]', space=smem, size = 0x4, offset = 0x4, fixed_abs, tag = 'smem constant byte address 0x4 - core index']
  #allocation1 [shape = 'u32[144,128]{1,0:T(1,128)}', space=vmem, size = 0x12000, scoped, tag = 'internal scratch']
  #allocation2 [shape = 'f32[8,1]{1,0:T(8,128)}', space=vmem, size = 0x1000, scoped, tag = 'scratch operand']
  #allocation3 [shape = 'f32[8,1]{1,0:T(8,128)}', space=vmem, size = 0x1000, scoped, tag = 'scratch operand']
  %s0 = inlined_call_operand.vmem [shape: f32[16,128], index: 0, kind: input, shape index: {}]
  %s1 = inlined_call_operand.vmem [shape: f32[16,128], index: 1, kind: input, shape index: {}]
  %s2 = inlined_call_operand.vmem [shape: f32[128,16], index: 2, kind: input, shape index: {}]
  %s3 = inlined_call_operand.hbm [shape: f32[16,128], index: 3, kind: output, shape index: {}]
  %s4 = sld [smem:[#allocation0]]
  $region53: #{tpu_custom_call.1} parent=0
    _
  %s6 = ssub.s32 1, %s4
  %s7 = scalar_select 0, %s6, %s4
  $region1: #{tpu_custom_call.1} parent=0
    #allocation4 [shape = 'u8[8192]{0}', space=vmem, size = 0x2000, scoped, tag = 'output window, operand 0']
    #allocation5 [shape = 's32[2]{0}', space=sflag, size = 0x8, scoped, tag = 'scoped memory for tpu_custom_call.1']
    %8 = vsyncpa [#allocation5], 0
    %s9 = scalar_lea.sflag [#allocation5], 1
    %10 = vsyncpa %s9, 0
    loop: start=0, step=1, limit=4
    $region2: #{tpu_custom_call.1} parent=1 // loop_pre_header
      _
    $region3: #{tpu_custom_call.1} parent=1 // loop_header
      %s12 = sphi 0, %s16
      %p13 = scmp.ge.s32.totalorder %s12, 4
      %s19 = sphi 0, %s31
      %s20 = sphi 0, %s27
      %s21 = sphi 0, %s19
      %s22 = sphi 0, %s20
      %s23 = sphi 0, %s21
      %s24 = sphi 0, %s22
      %s34 = sphi 0, %s36
      %s37 = sphi 0, %s34
      %s38 = sphi 0, %s37
      %s54 = sphi 0, %s38
      %s86 = sphi 0, %s88
      %s89 = sphi 0, %s86
      %s90 = sphi 0, %s89
      %s106 = sphi 0, %s90
      %s112 = sphi 0, %s114
      %s115 = sphi 0, %s112
      %s116 = sphi 0, %s115
      %s132 = sphi 0, %s116
      %s138 = sphi 0, %s140
      %s141 = sphi 0, %s138
      %s142 = sphi 0, %s141
      %s158 = sphi 0, %s142
    $region4: #{tpu_custom_call.1} parent=1 // loop_header_branch
      %15 = sbr.rel (%p13) target = $region8
    $region5: #{tpu_custom_call.1} parent=1 // loop_body
      %s17 = ssub.s32 %s12, 1
      %s18 = ssub.s32 %s12, 2
      %s25 = sadd.s32 1, %s20
      %p26 = scmp.ge.s32.totalorder %s25, 1
      %s27 = scalar_select %p26, 0, %s25
      %s28 = sadd.s32 1, %s19
      %s29 = scalar_select %p26, %s28, %s19
      %p30 = scmp.ge.s32.totalorder %s29, 2
      %s31 = scalar_select %p30, 0, %s29
      %s32 = ssub.s32 %s19, %s31
      %p33 = scmp.eq.s32.totalorder %s32, 0
      %s35 = sadd.s32 %s34, 1
      %s36 = scalar_select %p33, %s34, %s35
      %p39 = pneg %p33
      %p40 = scmp.eq.s32.totalorder %s12, 1
      %p41 = por %p39, %p40
      %p42 = scmp.ne.s32.totalorder %s34, %s37
      %p43 = scmp.eq.s32.totalorder %s12, 0
      %p44 = por %p42, %p43
      %p45 = scmp.ne.s32.totalorder %s34, %s37
      %p46 = scmp.eq.s32.totalorder %s17, 1
      %p47 = por %p45, %p46
      %p48 = scmp.ne.s32.totalorder %s37, %s38
      %p49 = scmp.eq.s32.totalorder %s17, 0
      %p50 = por %p48, %p49
      %p51 = scmp.ne.s32.totalorder %s37, %s38
      %p52 = scmp.eq.s32.totalorder %s18, 1
      %p53 = por %p51, %p52
      %p55 = scmp.ne.s32.totalorder %s38, %s54
      %p56 = scmp.eq.s32.totalorder %s18, 0
      %p57 = por %p55, %p56
      %s58 = sadd.s32 %s19, 1
      %p59 = scmp.lt.s32.totalorder %s58, 0
      %s60 = ssub.s32 0, %s58
      %s61 = scalar_select %p59, %s60, %s58
      %s62 = sand.u32 %s61, 1
      %s63 = ssub.s32 0, %s62
      %s64 = scalar_select %p59, %s63, %s62
      %p65 = scmp.ne.s32.totalorder %s64, 0
      %p66 = scmp.lt.s32.totalorder %s64, 0
      %p67 = pnand %p66, %p65
      %p68 = pneg %p67
      %s69 = sadd.s32 %s64, 2
      %s70 = scalar_select %p68, %s69, %s64
      %s71 = sadd.s32 %s31, 1
      %p72 = scmp.lt.s32.totalorder %s71, 0
      %s73 = ssub.s32 0, %s71
      %s74 = scalar_select %p72, %s73, %s71
      %s75 = sand.u32 %s74, 1
      %s76 = ssub.s32 0, %s75
      %s77 = scalar_select %p72, %s76, %s75
      %p78 = scmp.ne.s32.totalorder %s77, 0
      %p79 = scmp.lt.s32.totalorder %s77, 0
      %p80 = pnand %p79, %p78
      %p81 = pneg %p80
      %s82 = sadd.s32 %s77, 2
      %s83 = scalar_select %p81, %s82, %s77
      %s84 = ssub.s32 %s70, %s83
      %p85 = scmp.eq.s32.totalorder %s84, 0
      %s87 = sadd.s32 %s86, 1
      %s88 = scalar_select %p85, %s86, %s87
      %p91 = pneg %p85
      %p92 = scmp.eq.s32.totalorder %s12, 1
      %p93 = por %p91, %p92
      %p94 = scmp.ne.s32.totalorder %s86, %s89
      %p95 = scmp.eq.s32.totalorder %s12, 0
      %p96 = por %p94, %p95
      %p97 = scmp.ne.s32.totalorder %s86, %s89
      %p98 = scmp.eq.s32.totalorder %s17, 1
      %p99 = por %p97, %p98
      %p100 = scmp.ne.s32.totalorder %s89, %s90
      %p101 = scmp.eq.s32.totalorder %s17, 0
      %p102 = por %p100, %p101
      %p103 = scmp.ne.s32.totalorder %s89, %s90
      %p104 = scmp.eq.s32.totalorder %s18, 1
      %p105 = por %p103, %p104
      %p107 = scmp.ne.s32.totalorder %s90, %s106
      %p108 = scmp.eq.s32.totalorder %s18, 0
      %p109 = por %p107, %p108
      %s110 = ssub.s32 %s20, %s27
      %p111 = scmp.eq.s32.totalorder %s110, 0
      %s113 = sadd.s32 %s112, 1
      %s114 = scalar_select %p111, %s112, %s113
      %p117 = pneg %p111
      %p118 = scmp.eq.s32.totalorder %s12, 1
      %p119 = por %p117, %p118
      %p120 = scmp.ne.s32.totalorder %s112, %s115
      %p121 = scmp.eq.s32.totalorder %s12, 0
      %p122 = por %p120, %p121
      %p123 = scmp.ne.s32.totalorder %s112, %s115
      %p124 = scmp.eq.s32.totalorder %s17, 1
      %p125 = por %p123, %p124
      %p126 = scmp.ne.s32.totalorder %s115, %s116
      %p127 = scmp.eq.s32.totalorder %s17, 0
      %p128 = por %p126, %p127
      %p129 = scmp.ne.s32.totalorder %s115, %s116
      %p130 = scmp.eq.s32.totalorder %s18, 1
      %p131 = por %p129, %p130
      %p133 = scmp.ne.s32.totalorder %s116, %s132
      %p134 = scmp.eq.s32.totalorder %s18, 0
      %p135 = por %p133, %p134
      %s136 = ssub.s32 %s19, %s31
      %p137 = scmp.eq.s32.totalorder %s136, 0
      %s139 = sadd.s32 %s138, 1
      %s140 = scalar_select %p137, %s138, %s139
      %p143 = pneg %p137
      %p144 = scmp.eq.s32.totalorder %s12, 1
      %p145 = por %p143, %p144
      %p146 = scmp.ne.s32.totalorder %s138, %s141
      %p147 = scmp.eq.s32.totalorder %s12, 0
      %p148 = por %p146, %p147
      %p149 = scmp.ne.s32.totalorder %s138, %s141
      %p150 = scmp.eq.s32.totalorder %s17, 1
      %p151 = por %p149, %p150
      %p152 = scmp.ne.s32.totalorder %s141, %s142
      %p153 = scmp.eq.s32.totalorder %s17, 0
      %p154 = por %p152, %p153
      %p155 = scmp.ne.s32.totalorder %s141, %s142
      %p156 = scmp.eq.s32.totalorder %s18, 1
      %p157 = por %p155, %p156
      %p159 = scmp.ne.s32.totalorder %s142, %s158
      %p160 = scmp.eq.s32.totalorder %s18, 0
      %p161 = por %p159, %p160
      %p162 = scmp.le.s32.totalorder 1, %s12
      %p163 = scmp.lt.s32.totalorder %s12, 3
      %p164 = pnand %p162, %p163
      %p165 = pneg %p164
      // Predicated region
      $region9: #{tpu_custom_call.1} parent=5 // pred_check
        _
      $region10: #{tpu_custom_call.1} parent=5 // pred_check_branch
        %167 = sbr.rel (%p164) target = $region12
      $region11: #{tpu_custom_call.1} parent=5 // pred_region
        %s168 = ssub.s32 %s12, 1
        // Predicated region
        $region13: #{tpu_custom_call.1} parent=11 // pred_check
          %p169 = pneg %p128
        $region14: #{tpu_custom_call.1} parent=11 // pred_check_branch
          %171 = sbr.rel (%p169) target = $region16
        $region15: #{tpu_custom_call.1} parent=11 // pred_region
          %p172 = scmp.lt.s32.totalorder %s22, 0
          %s173 = scalar_select %p172, %s22, 0
          %s174 = smul.addr %s173, 8
          %s175 = scalar_lea.vmem %s2, %s174
        $region16: #{tpu_custom_call.1} parent=11 // pred_fallthru
          _
      $region12: #{tpu_custom_call.1} parent=5 // pred_fallthru
        _
      %p176 = scmp.lt.s32.totalorder %s12, 2
      // Predicated region
      $region17: #{tpu_custom_call.1} parent=5 // pred_check
        %p177 = pneg %p176
      $region18: #{tpu_custom_call.1} parent=5 // pred_check_branch
        %179 = sbr.rel (%p177) target = $region20
      $region19: #{tpu_custom_call.1} parent=5 // pred_region
        // Predicated region
        $region21: #{tpu_custom_call.1} parent=19 // pred_check
          %p180 = pneg %p44
        $region22: #{tpu_custom_call.1} parent=19 // pred_check_branch
          %182 = sbr.rel (%p180) target = $region24
        $region23: #{tpu_custom_call.1} parent=19 // pred_region
          %p183 = scmp.lt.s32.totalorder %s19, 1
          %s184 = scalar_select %p183, %s19, 1
          %s185 = smul.addr %s184, 8
          %s186 = scalar_lea.vmem %s0, %s185
        $region24: #{tpu_custom_call.1} parent=19 // pred_fallthru
          _
        // Predicated region
        $region25: #{tpu_custom_call.1} parent=19 // pred_check
          %p187 = pneg %p96
        $region26: #{tpu_custom_call.1} parent=19 // pred_check_branch
          %189 = sbr.rel (%p187) target = $region28
        $region27: #{tpu_custom_call.1} parent=19 // pred_region
          %s190 = sadd.s32 %s19, 1
          %p191 = scmp.lt.s32.totalorder %s190, 0
          %s192 = ssub.s32 0, %s190
          %s193 = scalar_select %p191, %s192, %s190
          %s194 = sand.u32 %s193, 1
          %s195 = ssub.s32 0, %s194
          %s196 = scalar_select %p191, %s195, %s194
          %p197 = scmp.ne.s32.totalorder %s196, 0
          %p198 = scmp.lt.s32.totalorder %s196, 0
          %p199 = pnand %p198, %p197
          %p200 = pneg %p199
          %s201 = sadd.s32 %s196, 2
          %s202 = scalar_select %p200, %s201, %s196
          %p203 = scmp.lt.s32.totalorder %s202, 1
          %s204 = scalar_select %p203, %s202, 1
          %s205 = smul.addr %s204, 8
          %s206 = scalar_lea.vmem %s1, %s205
          %s207 = sadd.s32 %s19, 1
          %p208 = scmp.lt.s32.totalorder %s207, 0
          %s209 = ssub.s32 0, %s207
          %s210 = scalar_select %p208, %s209, %s207
          %s211 = sand.u32 %s210, 1
          %s212 = ssub.s32 0, %s211
          %s213 = scalar_select %p208, %s212, %s211
          %p214 = scmp.ne.s32.totalorder %s213, 0
          %p215 = scmp.lt.s32.totalorder %s213, 0
          %p216 = pnand %p215, %p214
          %p217 = pneg %p216
          %s218 = sadd.s32 %s213, 2
          %s219 = scalar_select %p217, %s218, %s213
        $region28: #{tpu_custom_call.1} parent=19 // pred_fallthru
          _
      $region20: #{tpu_custom_call.1} parent=5 // pred_fallthru
        _
      %p220 = scmp.le.s32.totalorder 1, %s12
      %p221 = scmp.lt.s32.totalorder %s12, 3
      %p222 = pnand %p220, %p221
      %p223 = pneg %p222
      // Predicated region
      $region29: #{tpu_custom_call.1} parent=5 // pred_check
        _
      $region30: #{tpu_custom_call.1} parent=5 // pred_check_branch
        %225 = sbr.rel (%p222) target = $region32
      $region31: #{tpu_custom_call.1} parent=5 // pred_region
        %s226 = ssub.s32 %s12, 1
        %p227 = scmp.lt.s32.totalorder %s21, 1
        %s228 = scalar_select %p227, %s21, 1
        %s229 = smul.addr %s228, 8
        %s230 = scalar_lea.vmem %s0, %s229
        %p231 = pneg %p50
        %p232 = pneg %p47
        %s233 = sadd.s32 %s21, 1
        %p234 = scmp.lt.s32.totalorder %s233, 0
        %s235 = ssub.s32 0, %s233
        %s236 = scalar_select %p234, %s235, %s233
        %s237 = sand.u32 %s236, 1
        %s238 = ssub.s32 0, %s237
        %s239 = scalar_select %p234, %s238, %s237
        %p240 = scmp.ne.s32.totalorder %s239, 0
        %p241 = scmp.lt.s32.totalorder %s239, 0
        %p242 = pnand %p241, %p240
        %p243 = pneg %p242
        %s244 = sadd.s32 %s239, 2
        %s245 = scalar_select %p243, %s244, %s239
        %p246 = scmp.lt.s32.totalorder %s245, 1
        %s247 = scalar_select %p246, %s245, 1
        %s248 = smul.addr %s247, 8
        %s249 = scalar_lea.vmem %s1, %s248
        %p250 = pneg %p102
        %p251 = pneg %p99
        %p252 = scmp.lt.s32.totalorder %s22, 0
        %s253 = scalar_select %p252, %s22, 0
        %s254 = smul.addr %s253, 8
        %s255 = scalar_lea.vmem %s2, %s254
        %p256 = pneg %p128
        %p257 = pneg %p125
        %p258 = pneg %p154
        %p259 = pneg %p151
        %s260 = sand.u32 %s141, 1
        %s261 = scalar_lea.sflag [#allocation5], %s260
        %s262 = sand.u32 %s141, 1
        %s263 = smul.addr %s262, 8
        %s264 = scalar_lea.vmem [#allocation4], %s263
        %p265 = scmp.lt.s32.totalorder %s21, 1
        %s266 = scalar_select %p265, %s21, 1
        %s267 = smul.addr %s266, 8
        %s268 = scalar_lea.vmem %s0, %s267
        %s269 = sadd.s32 %s21, 1
        %p270 = scmp.lt.s32.totalorder %s269, 0
        %s271 = ssub.s32 0, %s269
        %s272 = scalar_select %p270, %s271, %s269
        %s273 = sand.u32 %s272, 1
        %s274 = ssub.s32 0, %s273
        %s275 = scalar_select %p270, %s274, %s273
        %p276 = scmp.ne.s32.totalorder %s275, 0
        %p277 = scmp.lt.s32.totalorder %s275, 0
        %p278 = pnand %p277, %p276
        %p279 = pneg %p278
        %s280 = sadd.s32 %s275, 2
        %s281 = scalar_select %p279, %s280, %s275
        %p282 = scmp.lt.s32.totalorder %s281, 1
        %s283 = scalar_select %p282, %s281, 1
        %s284 = smul.addr %s283, 8
        %s285 = scalar_lea.vmem %s1, %s284
        %s286 = sadd.s32 %s21, 1
        %p287 = scmp.lt.s32.totalorder %s286, 0
        %s288 = ssub.s32 0, %s286
        %s289 = scalar_select %p287, %s288, %s286
        %s290 = sand.u32 %s289, 1
        %s291 = ssub.s32 0, %s290
        %s292 = scalar_select %p287, %s291, %s290
        %p293 = scmp.ne.s32.totalorder %s292, 0
        %p294 = scmp.lt.s32.totalorder %s292, 0
        %p295 = pnand %p294, %p293
        %p296 = pneg %p295
        %s297 = sadd.s32 %s292, 2
        %s298 = scalar_select %p296, %s297, %s292
        %p299 = scmp.lt.s32.totalorder %s22, 0
        %s300 = scalar_select %p299, %s22, 0
        %s301 = smul.addr %s300, 8
        %s302 = scalar_lea.vmem %s2, %s301
        %p303 = scmp.eq.s32.totalorder %s22, 0
        // Predicated region
        $region33: #{tpu_custom_call.1} parent=31 // pred_check
          %p304 = pneg %p303
        $region34: #{tpu_custom_call.1} parent=31 // pred_check_branch
          %306 = sbr.rel (%p304) target = $region36
        $region35: #{tpu_custom_call.1} parent=31 // pred_region
          %vm307 = vcmask 7168
          %308 = vst.msk [vmem:[#allocation3] sm:$0xff] %vm307, 0.0
        $region36: #{tpu_custom_call.1} parent=31 // pred_fallthru
          _
        %v309 = vld [vmem:[%s268] sm:$0xff]
        %v310 = vld [vmem:[%s302] sm:$0xff]
        %v311 = vld [vmem:[%s302 + $0x8] sm:$0xff]
        %v312 = vld [vmem:[%s302 + $0x10] sm:$0xff]
        %v313 = vld [vmem:[%s302 + $0x18] sm:$0xff]
        %v314 = vld [vmem:[%s302 + $0x20] sm:$0xff]
        %v315 = vld [vmem:[%s302 + $0x28] sm:$0xff]
        %v316 = vld [vmem:[%s302 + $0x30] sm:$0xff]
        %v317 = vld [vmem:[%s302 + $0x38] sm:$0xff]
        %v318 = vld [vmem:[%s302 + $0x40] sm:$0xff]
        %v319 = vld [vmem:[%s302 + $0x48] sm:$0xff]
        %v320 = vld [vmem:[%s302 + $0x50] sm:$0xff]
        %v321 = vld [vmem:[%s302 + $0x58] sm:$0xff]
        %v322 = vld [vmem:[%s302 + $0x60] sm:$0xff]
        %v323 = vld [vmem:[%s302 + $0x68] sm:$0xff]
        %v324 = vld [vmem:[%s302 + $0x70] sm:$0xff]
        %v325 = vld [vmem:[%s302 + $0x78] sm:$0xff]
        %326 = vmatprep.subr.mxu0 0.0
        %327 = vmatpush1.msra.mxu0 %v310
        %328 = vmatprep.subr.mxu0 0.0
        %329 = vmatpush1.msra.mxu0 %v311
        %330 = vmatprep.subr.mxu0 0.0
        %331 = vmatpush1.msra.mxu0 %v312
        %332 = vmatprep.subr.mxu0 0.0
        %333 = vmatpush1.msra.mxu0 %v313
        %334 = vmatprep.subr.mxu0 0.0
        %335 = vmatpush1.msra.mxu0 %v314
        %336 = vmatprep.subr.mxu0 0.0
        %337 = vmatpush1.msra.mxu0 %v315
        %338 = vmatprep.subr.mxu0 0.0
        %339 = vmatpush1.msra.mxu0 %v316
        %340 = vmatprep.subr.mxu0 0.0
        %341 = vmatpush1.msra.mxu0 %v317
        %342 = vmatprep.subr.mxu0 0.0
        %343 = vmatpush1.msra.mxu0 %v318
        %344 = vmatprep.subr.mxu0 0.0
        %345 = vmatpush1.msra.mxu0 %v319
        %346 = vmatprep.subr.mxu0 0.0
        %347 = vmatpush1.msra.mxu0 %v320
        %348 = vmatprep.subr.mxu0 0.0
        %349 = vmatpush1.msra.mxu0 %v321
        %350 = vmatprep.subr.mxu0 0.0
        %351 = vmatpush1.msra.mxu0 %v322
        %352 = vmatprep.subr.mxu0 0.0
        %353 = vmatpush1.msra.mxu0 %v323
        %354 = vmatprep.subr.mxu0 0.0
        %355 = vmatpush1.msra.mxu0 %v324
        %356 = vmatprep.subr.mxu0 0.0
        %357 = vmatpush1.msra.mxu0 %v325
        %358 = vmatprep.subr.mxu0 0.0
        %359 = vmatpush1.msra.mxu0 0.0
        %360 = vmatprep.subr.mxu0 0.0
        %361 = vmatpush1.msra.mxu0 0.0
        %362 = vmatprep.subr.mxu0 0.0
        %363 = vmatpush1.msra.mxu0 0.0
        %364 = vmatprep.subr.mxu0 0.0
        %365 = vmatpush1.msra.mxu0 0.0
        %366 = vmatprep.subr.mxu0 0.0
        %367 = vmatpush1.msra.mxu0 0.0
        %368 = vmatprep.subr.mxu0 0.0
        %369 = vmatpush1.msra.mxu0 0.0
        %370 = vmatprep.subr.mxu0 0.0
        %371 = vmatpush1.msra.mxu0 0.0
        %372 = vmatprep.subr.mxu0 0.0
        %373 = vmatpush1.msra.mxu0 0.0
        %374 = vmatprep.subr.mxu0 0.0
        %375 = vmatpush1.msra.mxu0 0.0
        %376 = vmatprep.subr.mxu0 0.0
        %377 = vmatpush1.msra.mxu0 0.0
        %378 = vmatprep.subr.mxu0 0.0
        %379 = vmatpush1.msra.mxu0 0.0
        %380 = vmatprep.subr.mxu0 0.0
        %381 = vmatpush1.msra.mxu0 0.0
        %382 = vmatprep.subr.mxu0 0.0
        %383 = vmatpush1.msra.mxu0 0.0
        %384 = vmatprep.subr.mxu0 0.0
        %385 = vmatpush1.msra.mxu0 0.0
        %386 = vmatprep.subr.mxu0 0.0
        %387 = vmatpush1.msra.mxu0 0.0
        %388 = vmatprep.subr.mxu0 0.0
        %389 = vmatpush1.msra.mxu0 0.0
        %390 = vmatprep.mubr.f32.mxu0 0.0
        %391 = vmatmul.mubr.f32.gmra.mrb[0].mxu0 %v309
        %v392 = vpop.f32.mrb[0].mxu0
        %v393 = vadd.f32 0.0, %v392
        %v394 = vpop.f32.mrb[0].mxu0
        %395 = vdwg.mxu0
        %v396 = vlaneseq
        %v397 = vand.u32 %v396, 127
        %v398 = vlaneseq
        %v399 = vshrl.u32 %v398, 7
        %v400 = vsub.s32 %v397, %v399
        %s401 = smul.u32 %s21, 8
        %s402 = smul.u32 %s22, 16
        %s403 = ssub.s32 %s401, %s402
        %v404 = vstv %s403
        %vm405 = vcmp.eq.s32.totalorder %v400, %v404
        %v406 = vsel %vm405, -1e+30, %v393
        %v407 = vld [vmem:[#allocation3] sm:$0xff]
        %v408 = vsub.f32 %v406, 2.0
        %v409 = vmul.f32 %v408, 1.442695
        %v410 = vpow.pop %v409
        %vm411 = vcmask 130048
        %v412 = vsel %vm411, %v410, 0.0
        %413 = vadd.xlane.f32.xlu0 %v412
        %v414 = vpop.xlane.xlu0 %413
        %v415 = vadd.f32 %v407, %v414
        %vm416 = vcmask 7168
        %417 = vst.msk [vmem:[#allocation3] sm:$0xff] %vm416, %v415
        // Predicated region
        $region37: #{tpu_custom_call.1} parent=31 // pred_check
          %p418 = pneg %p303
        $region38: #{tpu_custom_call.1} parent=31 // pred_check_branch
          %420 = sbr.rel (%p418) target = $region40
        $region39: #{tpu_custom_call.1} parent=31 // pred_region
          %v421 = vld [vmem:[%s268] sm:$0xff]
          %v422 = vld [vmem:[%s285] sm:$0xff]
          %v423 = vmul.f32 %v421, %v422
          %424 = vadd.xlane.f32.xlu0 %v423
          %v425 = vpop.xlane.xlu0 %424
          %v426 = vmul.f32 %v425, 0.5
          %v427 = vld [vmem:[#allocation3] sm:$0xff]
          %v428 = vlog2.pop %v427
          %v429 = vmul.f32 %v428, 0.6931472
          %v430 = vadd.f32 %v429, 2.0
          %v431 = vsub.f32 %v430, %v426
          %433 = vset.pattern.permute.xlu0 0
          %434 = vperm.xlu0 %433, %v431
          %v435 = vpop.permute.xlu0 %434
          %437 = vst [vmem:[%s264] sm:$0xff] %v435
        $region40: #{tpu_custom_call.1} parent=31 // pred_fallthru
          _
        %s438 = sand.u32 %s141, 1
        %s439 = scalar_lea.sflag [#allocation5], %s438
        %s440 = sand.u32 %s141, 1
        %s441 = smul.addr %s440, 8
        %s442 = scalar_lea.vmem [#allocation4], %s441
        // Predicated region
        $region41: #{tpu_custom_call.1} parent=31 // pred_check
          %p443 = pneg %p151
        $region42: #{tpu_custom_call.1} parent=31 // pred_check_branch
          %445 = sbr.rel (%p443) target = $region44
        $region43: #{tpu_custom_call.1} parent=31 // pred_region
          %s447 = ssub.s32 128, 128
          %448 = vsyncadd %s439, %s447
          %s449 = smul.addr %s21, 128
          %s450 = scalar_lea.hbm %s3, %s449
          %s452 = sshll.u32 %s442, 4
          %s453 = int_to_ptr.vmem [resolvable:$true] %s452
          %455 = dma.vmem_to_hbm [thread:$0]  %s453, 128, %s450, %s439
        $region44: #{tpu_custom_call.1} parent=31 // pred_fallthru
          _
      $region32: #{tpu_custom_call.1} parent=5 // pred_fallthru
        _
      %p456 = scmp.le.s32.totalorder 2, %s12
      // Predicated region
      $region45: #{tpu_custom_call.1} parent=5 // pred_check
        %p457 = pneg %p456
      $region46: #{tpu_custom_call.1} parent=5 // pred_check_branch
        %459 = sbr.rel (%p457) target = $region48
      $region47: #{tpu_custom_call.1} parent=5 // pred_region
        %s460 = ssub.s32 %s12, 2
        // Predicated region
        $region49: #{tpu_custom_call.1} parent=47 // pred_check
          %p461 = pneg %p157
        $region50: #{tpu_custom_call.1} parent=47 // pred_check_branch
          %463 = sbr.rel (%p461) target = $region52
        $region51: #{tpu_custom_call.1} parent=47 // pred_region
          %s464 = sand.u32 %s142, 1
          %s465 = scalar_lea.sflag [#allocation5], %s464
          %s466 = sand.u32 %s142, 1
          %s467 = smul.addr %s466, 8
          %s468 = scalar_lea.vmem [#allocation4], %s467
          %469 = dma.done %s465, 128
        $region52: #{tpu_custom_call.1} parent=47 // pred_fallthru
          _
      $region48: #{tpu_custom_call.1} parent=5 // pred_fallthru
        _
    $region6: #{tpu_custom_call.1} parent=1 // loop_footer
      %s16 = sadd.s32 1, %s12
    $region7: #{tpu_custom_call.1} parent=1 // loop_footer_branch
      %11 = sbr.rel target = $region3
    $region8: #{tpu_custom_call.1} parent=1 // loop_exit
      _
    %470 = vsyncpa [#allocation5], 1
    %s471 = scalar_lea.sflag [#allocation5], 1
    %472 = vsyncpa %s471, 1

</llo_original>
